<compile_context>
chip_gen: v6e
topology: v6e:2x2x1
jax: 0.10.0
libtpu: 0.0.40
codegen_flags: <defaults>
</compile_context>

<pallas_src>
import jax
import jax.numpy as jnp
from jax.experimental import pallas as pl
from jax.experimental.pallas import tpu as pltpu


# ----------------------------------------------------------------------------
# Single fused Pallas kernel: extractors -> fusion -> head (per batch tile)
# ----------------------------------------------------------------------------
def _fused_pipeline_kernel(img_ref, aud_ref,
                           wi_ref, bi_ref,
                           wa_ref, ba_ref,
                           wf_img_ref, wf_aud_ref, bf_ref,
                           wh_ref, bh_ref,
                           o_ref):
    # Preprocessing constants are folded into wi (x/255) and ba (audio mean),
    # so activations go straight to the MXU.  bf16 operands, f32 accumulation.
    x_img = img_ref[...].astype(jnp.bfloat16)
    x_aud = aud_ref[...].astype(jnp.bfloat16)

    # ---- per-modality feature extractors: linear + ReLU (MXU + VPU) ----
    e_img = jnp.dot(x_img, wi_ref[...], preferred_element_type=jnp.float32)
    e_img = jnp.maximum(e_img + bi_ref[...], 0.0)
    e_aud = jnp.dot(x_aud, wa_ref[...], preferred_element_type=jnp.float32)
    e_aud = jnp.maximum(e_aud + ba_ref[...], 0.0)

    # ---- fusion: concat folded into split-weight matmuls ----
    fused = (jnp.dot(e_img.astype(jnp.bfloat16), wf_img_ref[...],
                     preferred_element_type=jnp.float32)
             + jnp.dot(e_aud.astype(jnp.bfloat16), wf_aud_ref[...],
                       preferred_element_type=jnp.float32)
             + bf_ref[...])
    fused = jnp.maximum(fused, 0.0)

    # ---- head: classifier logits, lane-dense (128-padded) output ----
    logits = jnp.dot(fused.astype(jnp.bfloat16), wh_ref[...],
                     preferred_element_type=jnp.float32)
    o_ref[...] = (logits + bh_ref[...]).astype(o_ref.dtype)


# ----------------------------------------------------------------------------
# Jitted wrapper: flatten, fold audio mean into bias, pad/tile batch, launch.
# ----------------------------------------------------------------------------
@jax.jit
def _fused_pipeline_forward(image, audio,
                            wi, bi, wa, ba, colsum_wa,
                            wf_img, wf_aud, bf,
                            wh, bh):
    """image: (B,C,H,W) f32, audio: (B,SEQ,FEAT) f32 -> (B, padded_classes) f32."""
    B = image.shape[0]
    img_flat = image.reshape(B, -1).astype(jnp.float32)
    aud_flat = audio.reshape(B, -1).astype(jnp.float32)

    # Batch-wide audio mean (matches the original processor's batch-coupled
    # semantics) folded into the audio bias: (x - m) @ Wa = x @ Wa - m * colsum(Wa).
    audio_mean = jnp.mean(aud_flat)
    ba_eff = ba - audio_mean * colsum_wa            # (1, hidden) f32

    d_img = img_flat.shape[1]
    d_aud = aud_flat.shape[1]
    hidden = wi.shape[1]
    nc_pad = wh.shape[1]                            # 128-padded classes

    # Batch tiling: fill MXU rows at large B, round up to f32 sublane (8) at small B.
    if B >= 256:
        tile_b = 256                                # sweep 256/512/1024 if desired
    else:
        tile_b = max(8, ((B + 7) // 8) * 8)
    pB = ((B + tile_b - 1) // tile_b) * tile_b
    if pB != B:
        img_flat = jnp.pad(img_flat, ((0, pB - B), (0, 0)))
        aud_flat = jnp.pad(aud_flat, ((0, pB - B), (0, 0)))

    grid = (pB // tile_b,)

    def _const_spec(shape):                         # weights: resident in VMEM
        return pl.BlockSpec(shape, lambda i: (0, 0))

    in_specs = [
        pl.BlockSpec((tile_b, d_img), lambda i: (i, 0)),   # image tile streams
        pl.BlockSpec((tile_b, d_aud), lambda i: (i, 0)),   # audio tile streams
        _const_spec(wi.shape), _const_spec(bi.shape),
        _const_spec(wa.shape), _const_spec(ba_eff.shape),
        _const_spec(wf_img.shape), _const_spec(wf_aud.shape), _const_spec(bf.shape),
        _const_spec(wh.shape), _const_spec(bh.shape),
    ]
    out_specs = pl.BlockSpec((tile_b, nc_pad), lambda i: (i, 0))

    operands = (img_flat, aud_flat, wi, bi, wa, ba_eff, wf_img, wf_aud, bf, wh, bh)

    flops = 2 * pB * (d_img * hidden + d_aud * hidden
                      + 2 * hidden * hidden + hidden * nc_pad)
    bytes_accessed = (pB * (d_img + d_aud + nc_pad) * 4
                      + sum(int(a.size) * a.dtype.itemsize
                            for a in (wi, bi, wa, ba_eff, wf_img, wf_aud, bf, wh, bh)))

    return pl.pallas_call(
        _fused_pipeline_kernel,
        grid=grid,
        out_shape=jax.ShapeDtypeStruct((pB, nc_pad), jnp.float32),
        in_specs=in_specs,
        out_specs=out_specs,
        compiler_params=pltpu.CompilerParams(
            dimension_semantics=("parallel",)),      # v7x: split tiles across 2 TCs
        cost_estimate=pl.CostEstimate(
            flops=flops, transcendentals=0, bytes_accessed=bytes_accessed),
    )(*operands)


# ----------------------------------------------------------------------------
# Deterministic parameter init (synthetic; no checkpoint load)
# ----------------------------------------------------------------------------
def _init_linear_params(key, in_dim, out_dim):
    kw, kb = jax.random.split(key)
    scale = 1.0 / jnp.sqrt(jnp.float32(in_dim))
    w = jax.random.uniform(kw, (in_dim, out_dim), jnp.float32, -scale, scale)
    b = jax.random.uniform(kb, (out_dim,), jnp.float32, -scale, scale)
    return w, b


# ----------------------------------------------------------------------------
# Pipeline: mirrors BasePipeline.forward, hot path fused into ONE Pallas kernel.
# ----------------------------------------------------------------------------
class PallasBasePipeline:
    def __init__(self, C=4, H=16, W=16, SEQ=8, FEAT=16,
                 hidden=32, num_classes=10, seed=42):
        self.hidden = hidden
        self.num_classes = num_classes

        k = jax.random.PRNGKey(seed)
        k_img, k_aud, k_fus, k_head = jax.random.split(k, 4)

        # Full-precision params (kept for the pure-JAX reference).
        self.params = {
            "image": _init_linear_params(k_img, C * H * W, hidden),
            "audio": _init_linear_params(k_aud, SEQ * FEAT, hidden),
            "fusion": _init_linear_params(k_fus, 2 * hidden, hidden),
            "head": _init_linear_params(k_head, hidden, num_classes),
        }

        wi, bi = self.params["image"]
        wa, ba = self.params["audio"]
        wf, bf = self.params["fusion"]
        wh, bh = self.params["head"]

        # Kernel-side params, pre-shaped once at init:
        #   * image /255 folded into wi; weights stored bf16 (halves weight DMA,
        #     bf16-native MXU on all gens), biases kept f32 as (1, N) rows,
        #   * colsum(wa) kept so the batch-wide audio mean folds into the bias,
        #   * fusion weight split along K (concat disappears),
        #   * head padded to 128 output lanes (unmasked, lane-dense stores).
        nc_pad = ((num_classes + 127) // 128) * 128
        wh_pad = jnp.zeros((hidden, nc_pad), jnp.float32).at[:, :num_classes].set(wh)
        bh_pad = jnp.zeros((1, nc_pad), jnp.float32).at[:, :num_classes].set(bh)

        self._kernel_args = (
            (wi / 255.0).astype(jnp.bfloat16),            # wi (scaled)
            bi.reshape(1, -1),                            # bi  (f32)
            wa.astype(jnp.bfloat16),                      # wa
            ba.reshape(1, -1),                            # ba  (f32)
            jnp.sum(wa, axis=0, keepdims=True),           # colsum_wa (f32)
            wf[:hidden, :].astype(jnp.bfloat16),          # wf_img
            wf[hidden:, :].astype(jnp.bfloat16),          # wf_aud
            bf.reshape(1, -1),                            # bf  (f32)
            wh_pad.astype(jnp.bfloat16),                  # wh (128-padded)
            bh_pad,                                       # bh (128-padded, f32)
        )

    def __call__(self, inputs):
        return self.forward(inputs)

    def forward(self, inputs):
        B = inputs["image"].shape[0]
        out_padded = _fused_pipeline_forward(
            inputs["image"], inputs["audio"], *self._kernel_args)
        return out_padded[:B, :self.num_classes]


# ----------------------------------------------------------------------------
# Pure-JAX reference (identical semantics to the original, full f32)
# ----------------------------------------------------------------------------
def _reference_forward(pipe, inputs):
    B = inputs["image"].shape[0]
    x_img = (inputs["image"] / 255.0).reshape(B, -1)
    x_aud = (inputs["audio"] - jnp.mean(inputs["audio"])).reshape(B, -1)
    wi, bi = pipe.params["image"]
    wa, ba = pipe.params["audio"]
    e_img = jnp.maximum(x_img @ wi + bi, 0.0)
    e_aud = jnp.maximum(x_aud @ wa + ba, 0.0)
    fused = jnp.concatenate([e_img, e_aud], axis=-1)
    wf, bf = pipe.params["fusion"]
    fused = jnp.maximum(fused @ wf + bf, 0.0)
    wh, bh = pipe.params["head"]
    return fused @ wh + bh


if __name__ == "__main__":
    C, H, W = 4, 16, 16
    SEQ, FEAT = 8, 16

    pipe = PallasBasePipeline(C=C, H=H, W=W, SEQ=SEQ, FEAT=FEAT,
                              hidden=32, num_classes=10)

    key = jax.random.PRNGKey(0)
    k_img, k_aud, k_img2, k_aud2 = jax.random.split(key, 4)

    # --- small-shape check (B=2, single padded tile) ---
    B = 2
    inputs = {
        "image": jax.random.uniform(k_img, (B, C, H, W), jnp.float32, 0.0, 255.0),
        "audio": jax.random.normal(k_aud, (B, SEQ, FEAT), jnp.float32),
    }
    out = jax.block_until_ready(pipe(inputs))
    ref = _reference_forward(pipe, inputs)
    assert out.shape == (B, 10), out.shape
    assert jnp.allclose(out, ref, atol=3e-2, rtol=3e-2), "mismatch vs reference (B=2)"

    # --- batched-throughput path (multi-tile grid + batch padding) ---
    B2 = 260
    inputs2 = {
        "image": jax.random.uniform(k_img2, (B2, C, H, W), jnp.float32, 0.0, 255.0),
        "audio": jax.random.normal(k_aud2, (B2, SEQ, FEAT), jnp.float32),
    }
    out2 = jax.block_until_ready(pipe(inputs2))
    ref2 = _reference_forward(pipe, inputs2)
    assert out2.shape == (B2, 10), out2.shape
    assert jnp.allclose(out2, ref2, atol=3e-2, rtol=3e-2), "mismatch vs reference (B=260)"

    print("KERNEL_OK")
</pallas_src>

<mosaic_0001>
module attributes {stable_mosaic.version = 11 : i64} {
  func.func @_fused_pipeline_kernel(%arg0: i32, %arg1: memref<8x1024xf32, #tpu.memory_space<vmem>>, %arg2: memref<8x128xf32, #tpu.memory_space<vmem>>, %arg3: memref<1024x32xbf16, #tpu.memory_space<vmem>>, %arg4: memref<1x32xf32, #tpu.memory_space<vmem>>, %arg5: memref<128x32xbf16, #tpu.memory_space<vmem>>, %arg6: memref<1x32xf32, #tpu.memory_space<vmem>>, %arg7: memref<32x32xbf16, #tpu.memory_space<vmem>>, %arg8: memref<32x32xbf16, #tpu.memory_space<vmem>>, %arg9: memref<1x32xf32, #tpu.memory_space<vmem>>, %arg10: memref<32x128xbf16, #tpu.memory_space<vmem>>, %arg11: memref<1x128xf32, #tpu.memory_space<vmem>>, %arg12: memref<8x128xf32, #tpu.memory_space<vmem>>) attributes {dimension_semantics = [#tpu.dimension_semantics<parallel>], iteration_bounds = array<i64: 1>, scalar_prefetch = 0 : i64, scratch_operands = 0 : i64, tpu.core_type = #tpu.core_type<tc>, window_params = [{transform_indices = @transform_0, window_bounds = array<i64: 8, 1024>}, {transform_indices = @transform_1, window_bounds = array<i64: 8, 128>}, {pipeline_mode = #tpu.pipeline_mode<synchronous>, transform_indices = @transform_2, window_bounds = array<i64: 1024, 32>}, {pipeline_mode = #tpu.pipeline_mode<synchronous>, transform_indices = @transform_3, window_bounds = array<i64: 1, 32>}, {pipeline_mode = #tpu.pipeline_mode<synchronous>, transform_indices = @transform_4, window_bounds = array<i64: 128, 32>}, {pipeline_mode = #tpu.pipeline_mode<synchronous>, transform_indices = @transform_5, window_bounds = array<i64: 1, 32>}, {pipeline_mode = #tpu.pipeline_mode<synchronous>, transform_indices = @transform_6, window_bounds = array<i64: 32, 32>}, {pipeline_mode = #tpu.pipeline_mode<synchronous>, transform_indices = @transform_7, window_bounds = array<i64: 32, 32>}, {pipeline_mode = #tpu.pipeline_mode<synchronous>, transform_indices = @transform_8, window_bounds = array<i64: 1, 32>}, {pipeline_mode = #tpu.pipeline_mode<synchronous>, transform_indices = @transform_9, window_bounds = array<i64: 32, 128>}, {pipeline_mode = #tpu.pipeline_mode<synchronous>, transform_indices = @transform_10, window_bounds = array<i64: 1, 128>}, {transform_indices = @transform_11, window_bounds = array<i64: 8, 128>}]} {
    %c0 = arith.constant 0 : index
    %c0_0 = arith.constant 0 : index
    %0 = vector.load %arg1[%c0, %c0_0] : memref<8x1024xf32, #tpu.memory_space<vmem>>, vector<8x1024xf32>
    %1 = arith.truncf %0 : vector<8x1024xf32> to vector<8x1024xbf16>
    %c0_1 = arith.constant 0 : index
    %c0_2 = arith.constant 0 : index
    %2 = vector.load %arg2[%c0_1, %c0_2] : memref<8x128xf32, #tpu.memory_space<vmem>>, vector<8x128xf32>
    %3 = arith.truncf %2 : vector<8x128xf32> to vector<8x128xbf16>
    %c0_3 = arith.constant 0 : index
    %c0_4 = arith.constant 0 : index
    %4 = vector.load %arg3[%c0_3, %c0_4] : memref<1024x32xbf16, #tpu.memory_space<vmem>>, vector<1024x32xbf16>
    %cst = arith.constant dense<0.000000e+00> : vector<8x32xf32>
    %5 = tpu.matmul %1, %4, %cst {dimension_numbers = #tpu.dot_dimension_numbers<[1], [0], [0], [1], [0, 0, 1, 1], [], []>} : vector<8x1024xbf16>, vector<1024x32xbf16>, vector<8x32xf32> -> vector<8x32xf32>
    %c0_5 = arith.constant 0 : index
    %c0_6 = arith.constant 0 : index
    %6 = vector.load %arg4[%c0_5, %c0_6] : memref<1x32xf32, #tpu.memory_space<vmem>>, vector<1x32xf32>
    %7 = vector.broadcast %6 : vector<1x32xf32> to vector<8x32xf32>
    %8 = arith.addf %5, %7 : vector<8x32xf32>
    %cst_7 = arith.constant 0.000000e+00 : f32
    %9 = vector.broadcast %cst_7 : f32 to vector<8x32xf32>
    %10 = arith.maximumf %8, %9 : vector<8x32xf32>
    %c0_8 = arith.constant 0 : index
    %c0_9 = arith.constant 0 : index
    %11 = vector.load %arg5[%c0_8, %c0_9] : memref<128x32xbf16, #tpu.memory_space<vmem>>, vector<128x32xbf16>
    %cst_10 = arith.constant dense<0.000000e+00> : vector<8x32xf32>
    %12 = tpu.matmul %3, %11, %cst_10 {dimension_numbers = #tpu.dot_dimension_numbers<[1], [0], [0], [1], [0, 0, 1, 1], [], []>} : vector<8x128xbf16>, vector<128x32xbf16>, vector<8x32xf32> -> vector<8x32xf32>
    %c0_11 = arith.constant 0 : index
    %c0_12 = arith.constant 0 : index
    %13 = vector.load %arg6[%c0_11, %c0_12] : memref<1x32xf32, #tpu.memory_space<vmem>>, vector<1x32xf32>
    %14 = vector.broadcast %13 : vector<1x32xf32> to vector<8x32xf32>
    %15 = arith.addf %12, %14 : vector<8x32xf32>
    %cst_13 = arith.constant 0.000000e+00 : f32
    %16 = vector.broadcast %cst_13 : f32 to vector<8x32xf32>
    %17 = arith.maximumf %15, %16 : vector<8x32xf32>
    %18 = arith.truncf %10 : vector<8x32xf32> to vector<8x32xbf16>
    %c0_14 = arith.constant 0 : index
    %c0_15 = arith.constant 0 : index
    %19 = vector.load %arg7[%c0_14, %c0_15] : memref<32x32xbf16, #tpu.memory_space<vmem>>, vector<32x32xbf16>
    %cst_16 = arith.constant dense<0.000000e+00> : vector<8x32xf32>
    %20 = tpu.matmul %18, %19, %cst_16 {dimension_numbers = #tpu.dot_dimension_numbers<[1], [0], [0], [1], [0, 0, 1, 1], [], []>} : vector<8x32xbf16>, vector<32x32xbf16>, vector<8x32xf32> -> vector<8x32xf32>
    %21 = arith.truncf %17 : vector<8x32xf32> to vector<8x32xbf16>
    %c0_17 = arith.constant 0 : index
    %c0_18 = arith.constant 0 : index
    %22 = vector.load %arg8[%c0_17, %c0_18] : memref<32x32xbf16, #tpu.memory_space<vmem>>, vector<32x32xbf16>
    %cst_19 = arith.constant dense<0.000000e+00> : vector<8x32xf32>
    %23 = tpu.matmul %21, %22, %cst_19 {dimension_numbers = #tpu.dot_dimension_numbers<[1], [0], [0], [1], [0, 0, 1, 1], [], []>} : vector<8x32xbf16>, vector<32x32xbf16>, vector<8x32xf32> -> vector<8x32xf32>
    %24 = arith.addf %20, %23 : vector<8x32xf32>
    %c0_20 = arith.constant 0 : index
    %c0_21 = arith.constant 0 : index
    %25 = vector.load %arg9[%c0_20, %c0_21] : memref<1x32xf32, #tpu.memory_space<vmem>>, vector<1x32xf32>
    %26 = vector.broadcast %25 : vector<1x32xf32> to vector<8x32xf32>
    %27 = arith.addf %24, %26 : vector<8x32xf32>
    %cst_22 = arith.constant 0.000000e+00 : f32
    %28 = vector.broadcast %cst_22 : f32 to vector<8x32xf32>
    %29 = arith.maximumf %27, %28 : vector<8x32xf32>
    %30 = arith.truncf %29 : vector<8x32xf32> to vector<8x32xbf16>
    %c0_23 = arith.constant 0 : index
    %c0_24 = arith.constant 0 : index
    %31 = vector.load %arg10[%c0_23, %c0_24] : memref<32x128xbf16, #tpu.memory_space<vmem>>, vector<32x128xbf16>
    %cst_25 = arith.constant dense<0.000000e+00> : vector<8x128xf32>
    %32 = tpu.matmul %30, %31, %cst_25 {dimension_numbers = #tpu.dot_dimension_numbers<[1], [0], [0], [1], [0, 0, 1, 1], [], []>} : vector<8x32xbf16>, vector<32x128xbf16>, vector<8x128xf32> -> vector<8x128xf32>
    %c0_26 = arith.constant 0 : index
    %c0_27 = arith.constant 0 : index
    %33 = vector.load %arg11[%c0_26, %c0_27] : memref<1x128xf32, #tpu.memory_space<vmem>>, vector<1x128xf32>
    %34 = vector.broadcast %33 : vector<1x128xf32> to vector<8x128xf32>
    %35 = arith.addf %32, %34 : vector<8x128xf32>
    %c0_28 = arith.constant 0 : index
    %c0_29 = arith.constant 0 : index
    %36 = vector.load %arg12[%c0_28, %c0_29] : memref<8x128xf32, #tpu.memory_space<vmem>>, vector<8x128xf32>
    tpu.vector_store %arg12[%c0_28, %c0_29], %35 {strides = array<i32>} : memref<8x128xf32, #tpu.memory_space<vmem>>, vector<8x128xf32>,
    return
  }
  func.func @transform_0(%arg0: i32) -> (i32, i32) {
    %c0_i32 = arith.constant 0 : i32
    %c0_i32_0 = arith.constant 0 : i32
    return %arg0, %c0_i32 : i32, i32
  }
  func.func @transform_1(%arg0: i32) -> (i32, i32) {
    %c0_i32 = arith.constant 0 : i32
    %c0_i32_0 = arith.constant 0 : i32
    return %arg0, %c0_i32 : i32, i32
  }
  func.func @transform_2(%arg0: i32) -> (i32, i32) {
    %c0_i32 = arith.constant 0 : i32
    %c0_i32_0 = arith.constant 0 : i32
    %c0_i32_1 = arith.constant 0 : i32
    return %c0_i32, %c0_i32_0 : i32, i32
  }
  func.func @transform_3(%arg0: i32) -> (i32, i32) {
    %c0_i32 = arith.constant 0 : i32
    %c0_i32_0 = arith.constant 0 : i32
    %c0_i32_1 = arith.constant 0 : i32
    return %c0_i32, %c0_i32_0 : i32, i32
  }
  func.func @transform_4(%arg0: i32) -> (i32, i32) {
    %c0_i32 = arith.constant 0 : i32
    %c0_i32_0 = arith.constant 0 : i32
    %c0_i32_1 = arith.constant 0 : i32
    return %c0_i32, %c0_i32_0 : i32, i32
  }
  func.func @transform_5(%arg0: i32) -> (i32, i32) {
    %c0_i32 = arith.constant 0 : i32
    %c0_i32_0 = arith.constant 0 : i32
    %c0_i32_1 = arith.constant 0 : i32
    return %c0_i32, %c0_i32_0 : i32, i32
  }
  func.func @transform_6(%arg0: i32) -> (i32, i32) {
    %c0_i32 = arith.constant 0 : i32
    %c0_i32_0 = arith.constant 0 : i32
    %c0_i32_1 = arith.constant 0 : i32
    return %c0_i32, %c0_i32_0 : i32, i32
  }
  func.func @transform_7(%arg0: i32) -> (i32, i32) {
    %c0_i32 = arith.constant 0 : i32
    %c0_i32_0 = arith.constant 0 : i32
    %c0_i32_1 = arith.constant 0 : i32
    return %c0_i32, %c0_i32_0 : i32, i32
  }
  func.func @transform_8(%arg0: i32) -> (i32, i32) {
    %c0_i32 = arith.constant 0 : i32
    %c0_i32_0 = arith.constant 0 : i32
    %c0_i32_1 = arith.constant 0 : i32
    return %c0_i32, %c0_i32_0 : i32, i32
  }
  func.func @transform_9(%arg0: i32) -> (i32, i32) {
    %c0_i32 = arith.constant 0 : i32
    %c0_i32_0 = arith.constant 0 : i32
    %c0_i32_1 = arith.constant 0 : i32
    return %c0_i32, %c0_i32_0 : i32, i32
  }
  func.func @transform_10(%arg0: i32) -> (i32, i32) {
    %c0_i32 = arith.constant 0 : i32
    %c0_i32_0 = arith.constant 0 : i32
    %c0_i32_1 = arith.constant 0 : i32
    return %c0_i32, %c0_i32_0 : i32, i32
  }
  func.func @transform_11(%arg0: i32) -> (i32, i32) {
    %c0_i32 = arith.constant 0 : i32
    %c0_i32_0 = arith.constant 0 : i32
    return %arg0, %c0_i32 : i32, i32
  }
}

</mosaic_0001>

<llo_original>
// kernel: _fused_pipeline_forward.1
$region0: #{_fused_pipeline_forward.1}
  #allocation0 [shape = 'u32[]', space=smem, size = 0x4, offset = 0x4, fixed_abs, tag = 'smem constant byte address 0x4 - core index']
  #allocation1 [shape = 'u32[144,128]{1,0:T(1,128)}', space=vmem, size = 0x12000, scoped, tag = 'internal scratch']
  %s0 = inlined_call_operand.vmem [shape: f32[8,1024], index: 0, kind: input, shape index: {}]
  %s1 = inlined_call_operand.vmem [shape: f32[8,128], index: 1, kind: input, shape index: {}]
  %s2 = inlined_call_operand.vmem [shape: bf16[1024,32], index: 2, kind: input, shape index: {}]
  %s3 = inlined_call_operand.vmem [shape: f32[1,32], index: 3, kind: input, shape index: {}]
  %s4 = inlined_call_operand.vmem [shape: bf16[128,32], index: 4, kind: input, shape index: {}]
  %s5 = inlined_call_operand.vmem [shape: f32[1,32], index: 5, kind: input, shape index: {}]
  %s6 = inlined_call_operand.vmem [shape: bf16[32,32], index: 6, kind: input, shape index: {}]
  %s7 = inlined_call_operand.vmem [shape: bf16[32,32], index: 7, kind: input, shape index: {}]
  %s8 = inlined_call_operand.vmem [shape: f32[1,32], index: 8, kind: input, shape index: {}]
  %s9 = inlined_call_operand.vmem [shape: bf16[32,128], index: 9, kind: input, shape index: {}]
  %s10 = inlined_call_operand.vmem [shape: f32[1,128], index: 10, kind: input, shape index: {}]
  %s11 = inlined_call_operand.hbm [shape: f32[8,128], index: 11, kind: output, shape index: {}]
  %s12 = sld [smem:[#allocation0]]
  $region54: #{_fused_pipeline_forward.1} parent=0
    _
  %s14 = ssub.s32 1, %s12
  %s15 = scalar_select 0, %s14, %s12
  $region1: #{_fused_pipeline_forward.1} parent=0
    #allocation2 [shape = 'u8[4096]{0}', space=vmem, size = 0x1000, scoped, tag = 'output window, operand 0, single buffered']
    #allocation3 [shape = 's32[1]{0}', space=sflag, size = 0x4, scoped, tag = 'scoped memory for _fused_pipeline_forward.1']
    %16 = vsyncpa [#allocation3], 0
    // Predicated region
    $region2: #{_fused_pipeline_forward.1} parent=1 // pred_check
      _
    $region3: #{_fused_pipeline_forward.1} parent=1 // pred_check_branch
      %18 = sbr.rel (0) target = $region5
    $region4: #{_fused_pipeline_forward.1} parent=1 // pred_region
      _
    $region5: #{_fused_pipeline_forward.1} parent=1 // pred_fallthru
      _
    // Predicated region
    $region6: #{_fused_pipeline_forward.1} parent=1 // pred_check
      _
    $region7: #{_fused_pipeline_forward.1} parent=1 // pred_check_branch
      %20 = sbr.rel (0) target = $region9
    $region8: #{_fused_pipeline_forward.1} parent=1 // pred_region
      _
    $region9: #{_fused_pipeline_forward.1} parent=1 // pred_fallthru
      _
    // Predicated region
    $region10: #{_fused_pipeline_forward.1} parent=1 // pred_check
      _
    $region11: #{_fused_pipeline_forward.1} parent=1 // pred_check_branch
      %22 = sbr.rel (0) target = $region13
    $region12: #{_fused_pipeline_forward.1} parent=1 // pred_region
      _
    $region13: #{_fused_pipeline_forward.1} parent=1 // pred_fallthru
      _
    // Predicated region
    $region14: #{_fused_pipeline_forward.1} parent=1 // pred_check
      _
    $region15: #{_fused_pipeline_forward.1} parent=1 // pred_check_branch
      %24 = sbr.rel (0) target = $region17
    $region16: #{_fused_pipeline_forward.1} parent=1 // pred_region
      _
    $region17: #{_fused_pipeline_forward.1} parent=1 // pred_fallthru
      _
    // Predicated region
    $region18: #{_fused_pipeline_forward.1} parent=1 // pred_check
      _
    $region19: #{_fused_pipeline_forward.1} parent=1 // pred_check_branch
      %26 = sbr.rel (0) target = $region21
    $region20: #{_fused_pipeline_forward.1} parent=1 // pred_region
      _
    $region21: #{_fused_pipeline_forward.1} parent=1 // pred_fallthru
      _
    // Predicated region
    $region22: #{_fused_pipeline_forward.1} parent=1 // pred_check
      _
    $region23: #{_fused_pipeline_forward.1} parent=1 // pred_check_branch
      %28 = sbr.rel (0) target = $region25
    $region24: #{_fused_pipeline_forward.1} parent=1 // pred_region
      _
    $region25: #{_fused_pipeline_forward.1} parent=1 // pred_fallthru
      _
    // Predicated region
    $region26: #{_fused_pipeline_forward.1} parent=1 // pred_check
      _
    $region27: #{_fused_pipeline_forward.1} parent=1 // pred_check_branch
      %30 = sbr.rel (0) target = $region29
    $region28: #{_fused_pipeline_forward.1} parent=1 // pred_region
      _
    $region29: #{_fused_pipeline_forward.1} parent=1 // pred_fallthru
      _
    // Predicated region
    $region30: #{_fused_pipeline_forward.1} parent=1 // pred_check
      _
    $region31: #{_fused_pipeline_forward.1} parent=1 // pred_check_branch
      %32 = sbr.rel (0) target = $region33
    $region32: #{_fused_pipeline_forward.1} parent=1 // pred_region
      _
    $region33: #{_fused_pipeline_forward.1} parent=1 // pred_fallthru
      _
    // Predicated region
    $region34: #{_fused_pipeline_forward.1} parent=1 // pred_check
      _
    $region35: #{_fused_pipeline_forward.1} parent=1 // pred_check_branch
      %34 = sbr.rel (0) target = $region37
    $region36: #{_fused_pipeline_forward.1} parent=1 // pred_region
      _
    $region37: #{_fused_pipeline_forward.1} parent=1 // pred_fallthru
      _
    // Predicated region
    $region38: #{_fused_pipeline_forward.1} parent=1 // pred_check
      _
    $region39: #{_fused_pipeline_forward.1} parent=1 // pred_check_branch
      %36 = sbr.rel (0) target = $region41
    $region40: #{_fused_pipeline_forward.1} parent=1 // pred_region
      _
    $region41: #{_fused_pipeline_forward.1} parent=1 // pred_fallthru
      _
    // Predicated region
    $region42: #{_fused_pipeline_forward.1} parent=1 // pred_check
      _
    $region43: #{_fused_pipeline_forward.1} parent=1 // pred_check_branch
      %38 = sbr.rel (0) target = $region45
    $region44: #{_fused_pipeline_forward.1} parent=1 // pred_region
      _
    $region45: #{_fused_pipeline_forward.1} parent=1 // pred_fallthru
      _
    %v40 = vld [vmem:[%s0] sm:$0xff]
    %v41 = vld [vmem:[%s0 + $0x8] sm:$0xff]
    %v42 = vld [vmem:[%s0 + $0x10] sm:$0xff]
    %v43 = vld [vmem:[%s0 + $0x18] sm:$0xff]
    %v44 = vld [vmem:[%s0 + $0x20] sm:$0xff]
    %v45 = vld [vmem:[%s0 + $0x28] sm:$0xff]
    %v46 = vld [vmem:[%s0 + $0x30] sm:$0xff]
    %v47 = vld [vmem:[%s0 + $0x38] sm:$0xff]
    %v48 = vpack.c.bf16 %v40, %v40
    %v49 = vpack.c.bf16 %v41, %v41
    %v50 = vpack.c.bf16 %v42, %v42
    %v51 = vpack.c.bf16 %v43, %v43
    %v52 = vpack.c.bf16 %v44, %v44
    %v53 = vpack.c.bf16 %v45, %v45
    %v54 = vpack.c.bf16 %v46, %v46
    %v55 = vpack.c.bf16 %v47, %v47
    %v56 = vld [vmem:[%s1] sm:$0xff]
    %v57 = vpack.c.bf16 %v56, %v56
    %v58 = vld [vmem:[%s2] sm:$0xf]
    %v59 = vld [vmem:[%s2 + $0x4] sm:$0xf]
    %v60 = vld [vmem:[%s2 + $0x8] sm:$0xf]
    %v61 = vld [vmem:[%s2 + $0xc] sm:$0xf]
    %v62 = vld [vmem:[%s2 + $0x10] sm:$0xf]
    %v63 = vld [vmem:[%s2 + $0x14] sm:$0xf]
    %v64 = vld [vmem:[%s2 + $0x18] sm:$0xf]
    %v65 = vld [vmem:[%s2 + $0x1c] sm:$0xf]
    %v66 = vld [vmem:[%s2 + $0x20] sm:$0xf]
    %v67 = vld [vmem:[%s2 + $0x24] sm:$0xf]
    %v68 = vld [vmem:[%s2 + $0x28] sm:$0xf]
    %v69 = vld [vmem:[%s2 + $0x2c] sm:$0xf]
    %v70 = vld [vmem:[%s2 + $0x30] sm:$0xf]
    %v71 = vld [vmem:[%s2 + $0x34] sm:$0xf]
    %v72 = vld [vmem:[%s2 + $0x38] sm:$0xf]
    %v73 = vld [vmem:[%s2 + $0x3c] sm:$0xf]
    %v74 = vld [vmem:[%s2 + $0x40] sm:$0xf]
    %v75 = vld [vmem:[%s2 + $0x44] sm:$0xf]
    %v76 = vld [vmem:[%s2 + $0x48] sm:$0xf]
    %v77 = vld [vmem:[%s2 + $0x4c] sm:$0xf]
    %v78 = vld [vmem:[%s2 + $0x50] sm:$0xf]
    %v79 = vld [vmem:[%s2 + $0x54] sm:$0xf]
    %v80 = vld [vmem:[%s2 + $0x58] sm:$0xf]
    %v81 = vld [vmem:[%s2 + $0x5c] sm:$0xf]
    %v82 = vld [vmem:[%s2 + $0x60] sm:$0xf]
    %v83 = vld [vmem:[%s2 + $0x64] sm:$0xf]
    %v84 = vld [vmem:[%s2 + $0x68] sm:$0xf]
    %v85 = vld [vmem:[%s2 + $0x6c] sm:$0xf]
    %v86 = vld [vmem:[%s2 + $0x70] sm:$0xf]
    %v87 = vld [vmem:[%s2 + $0x74] sm:$0xf]
    %v88 = vld [vmem:[%s2 + $0x78] sm:$0xf]
    %v89 = vld [vmem:[%s2 + $0x7c] sm:$0xf]
    %v90 = vld [vmem:[%s2 + $0x80] sm:$0xf]
    %v91 = vld [vmem:[%s2 + $0x84] sm:$0xf]
    %v92 = vld [vmem:[%s2 + $0x88] sm:$0xf]
    %v93 = vld [vmem:[%s2 + $0x8c] sm:$0xf]
    %v94 = vld [vmem:[%s2 + $0x90] sm:$0xf]
    %v95 = vld [vmem:[%s2 + $0x94] sm:$0xf]
    %v96 = vld [vmem:[%s2 + $0x98] sm:$0xf]
    %v97 = vld [vmem:[%s2 + $0x9c] sm:$0xf]
    %v98 = vld [vmem:[%s2 + $0xa0] sm:$0xf]
    %v99 = vld [vmem:[%s2 + $0xa4] sm:$0xf]
    %v100 = vld [vmem:[%s2 + $0xa8] sm:$0xf]
    %v101 = vld [vmem:[%s2 + $0xac] sm:$0xf]
    %v102 = vld [vmem:[%s2 + $0xb0] sm:$0xf]
    %v103 = vld [vmem:[%s2 + $0xb4] sm:$0xf]
    %v104 = vld [vmem:[%s2 + $0xb8] sm:$0xf]
    %v105 = vld [vmem:[%s2 + $0xbc] sm:$0xf]
    %v106 = vld [vmem:[%s2 + $0xc0] sm:$0xf]
    %v107 = vld [vmem:[%s2 + $0xc4] sm:$0xf]
    %v108 = vld [vmem:[%s2 + $0xc8] sm:$0xf]
    %v109 = vld [vmem:[%s2 + $0xcc] sm:$0xf]
    %v110 = vld [vmem:[%s2 + $0xd0] sm:$0xf]
    %v111 = vld [vmem:[%s2 + $0xd4] sm:$0xf]
    %v112 = vld [vmem:[%s2 + $0xd8] sm:$0xf]
    %v113 = vld [vmem:[%s2 + $0xdc] sm:$0xf]
    %v114 = vld [vmem:[%s2 + $0xe0] sm:$0xf]
    %v115 = vld [vmem:[%s2 + $0xe4] sm:$0xf]
    %v116 = vld [vmem:[%s2 + $0xe8] sm:$0xf]
    %v117 = vld [vmem:[%s2 + $0xec] sm:$0xf]
    %v118 = vld [vmem:[%s2 + $0xf0] sm:$0xf]
    %v119 = vld [vmem:[%s2 + $0xf4] sm:$0xf]
    %v120 = vld [vmem:[%s2 + $0xf8] sm:$0xf]
    %v121 = vld [vmem:[%s2 + $0xfc] sm:$0xf]
    %v122 = vld [vmem:[%s2 + $0x100] sm:$0xf]
    %v123 = vld [vmem:[%s2 + $0x104] sm:$0xf]
    %v124 = vld [vmem:[%s2 + $0x108] sm:$0xf]
    %v125 = vld [vmem:[%s2 + $0x10c] sm:$0xf]
    %v126 = vld [vmem:[%s2 + $0x110] sm:$0xf]
    %v127 = vld [vmem:[%s2 + $0x114] sm:$0xf]
    %v128 = vld [vmem:[%s2 + $0x118] sm:$0xf]
    %v129 = vld [vmem:[%s2 + $0x11c] sm:$0xf]
    %v130 = vld [vmem:[%s2 + $0x120] sm:$0xf]
    %v131 = vld [vmem:[%s2 + $0x124] sm:$0xf]
    %v132 = vld [vmem:[%s2 + $0x128] sm:$0xf]
    %v133 = vld [vmem:[%s2 + $0x12c] sm:$0xf]
    %v134 = vld [vmem:[%s2 + $0x130] sm:$0xf]
    %v135 = vld [vmem:[%s2 + $0x134] sm:$0xf]
    %v136 = vld [vmem:[%s2 + $0x138] sm:$0xf]
    %v137 = vld [vmem:[%s2 + $0x13c] sm:$0xf]
    %v138 = vld [vmem:[%s2 + $0x140] sm:$0xf]
    %v139 = vld [vmem:[%s2 + $0x144] sm:$0xf]
    %v140 = vld [vmem:[%s2 + $0x148] sm:$0xf]
    %v141 = vld [vmem:[%s2 + $0x14c] sm:$0xf]
    %v142 = vld [vmem:[%s2 + $0x150] sm:$0xf]
    %v143 = vld [vmem:[%s2 + $0x154] sm:$0xf]
    %v144 = vld [vmem:[%s2 + $0x158] sm:$0xf]
    %v145 = vld [vmem:[%s2 + $0x15c] sm:$0xf]
    %v146 = vld [vmem:[%s2 + $0x160] sm:$0xf]
    %v147 = vld [vmem:[%s2 + $0x164] sm:$0xf]
    %v148 = vld [vmem:[%s2 + $0x168] sm:$0xf]
    %v149 = vld [vmem:[%s2 + $0x16c] sm:$0xf]
    %v150 = vld [vmem:[%s2 + $0x170] sm:$0xf]
    %v151 = vld [vmem:[%s2 + $0x174] sm:$0xf]
    %v152 = vld [vmem:[%s2 + $0x178] sm:$0xf]
    %v153 = vld [vmem:[%s2 + $0x17c] sm:$0xf]
    %v154 = vld [vmem:[%s2 + $0x180] sm:$0xf]
    %v155 = vld [vmem:[%s2 + $0x184] sm:$0xf]
    %v156 = vld [vmem:[%s2 + $0x188] sm:$0xf]
    %v157 = vld [vmem:[%s2 + $0x18c] sm:$0xf]
    %v158 = vld [vmem:[%s2 + $0x190] sm:$0xf]
    %v159 = vld [vmem:[%s2 + $0x194] sm:$0xf]
    %v160 = vld [vmem:[%s2 + $0x198] sm:$0xf]
    %v161 = vld [vmem:[%s2 + $0x19c] sm:$0xf]
    %v162 = vld [vmem:[%s2 + $0x1a0] sm:$0xf]
    %v163 = vld [vmem:[%s2 + $0x1a4] sm:$0xf]
    %v164 = vld [vmem:[%s2 + $0x1a8] sm:$0xf]
    %v165 = vld [vmem:[%s2 + $0x1ac] sm:$0xf]
    %v166 = vld [vmem:[%s2 + $0x1b0] sm:$0xf]
    %v167 = vld [vmem:[%s2 + $0x1b4] sm:$0xf]
    %v168 = vld [vmem:[%s2 + $0x1b8] sm:$0xf]
    %v169 = vld [vmem:[%s2 + $0x1bc] sm:$0xf]
    %v170 = vld [vmem:[%s2 + $0x1c0] sm:$0xf]
    %v171 = vld [vmem:[%s2 + $0x1c4] sm:$0xf]
    %v172 = vld [vmem:[%s2 + $0x1c8] sm:$0xf]
    %v173 = vld [vmem:[%s2 + $0x1cc] sm:$0xf]
    %v174 = vld [vmem:[%s2 + $0x1d0] sm:$0xf]
    %v175 = vld [vmem:[%s2 + $0x1d4] sm:$0xf]
    %v176 = vld [vmem:[%s2 + $0x1d8] sm:$0xf]
    %v177 = vld [vmem:[%s2 + $0x1dc] sm:$0xf]
    %v178 = vld [vmem:[%s2 + $0x1e0] sm:$0xf]
    %v179 = vld [vmem:[%s2 + $0x1e4] sm:$0xf]
    %v180 = vld [vmem:[%s2 + $0x1e8] sm:$0xf]
    %v181 = vld [vmem:[%s2 + $0x1ec] sm:$0xf]
    %v182 = vld [vmem:[%s2 + $0x1f0] sm:$0xf]
    %v183 = vld [vmem:[%s2 + $0x1f4] sm:$0xf]
    %v184 = vld [vmem:[%s2 + $0x1f8] sm:$0xf]
    %v185 = vld [vmem:[%s2 + $0x1fc] sm:$0xf]
    %v186 = vld [vmem:[%s3] sm:$0x1]
    %v188 = vlaneseq
    %v189 = vshrl.u32 %v188, 7
    %v190 = vsub.s32 0, %v189
    %v191 = vrot.slane %v186, %v190
    %v321 = vunpack.c.l.b16 %v58
    %v322 = vunpack.c.l.b16 %v59
    %v323 = vunpack.c.l.b16 %v60
    %v324 = vunpack.c.l.b16 %v61
    %v325 = vunpack.c.l.b16 %v62
    %v326 = vunpack.c.l.b16 %v63
    %v327 = vunpack.c.l.b16 %v64
    %v328 = vunpack.c.l.b16 %v65
    %v329 = vunpack.c.l.b16 %v66
    %v330 = vunpack.c.l.b16 %v67
    %v331 = vunpack.c.l.b16 %v68
    %v332 = vunpack.c.l.b16 %v69
    %v333 = vunpack.c.l.b16 %v70
    %v334 = vunpack.c.l.b16 %v71
    %v335 = vunpack.c.l.b16 %v72
    %v336 = vunpack.c.l.b16 %v73
    %v337 = vunpack.c.l.b16 %v74
    %v338 = vunpack.c.l.b16 %v75
    %v339 = vunpack.c.l.b16 %v76
    %v340 = vunpack.c.l.b16 %v77
    %v341 = vunpack.c.l.b16 %v78
    %v342 = vunpack.c.l.b16 %v79
    %v343 = vunpack.c.l.b16 %v80
    %v344 = vunpack.c.l.b16 %v81
    %v345 = vunpack.c.l.b16 %v82
    %v346 = vunpack.c.l.b16 %v83
    %v347 = vunpack.c.l.b16 %v84
    %v348 = vunpack.c.l.b16 %v85
    %v349 = vunpack.c.l.b16 %v86
    %v350 = vunpack.c.l.b16 %v87
    %v351 = vunpack.c.l.b16 %v88
    %v352 = vunpack.c.l.b16 %v89
    %v353 = vunpack.c.l.b16 %v90
    %v354 = vunpack.c.l.b16 %v91
    %v355 = vunpack.c.l.b16 %v92
    %v356 = vunpack.c.l.b16 %v93
    %v357 = vunpack.c.l.b16 %v94
    %v358 = vunpack.c.l.b16 %v95
    %v359 = vunpack.c.l.b16 %v96
    %v360 = vunpack.c.l.b16 %v97
    %v361 = vunpack.c.l.b16 %v98
    %v362 = vunpack.c.l.b16 %v99
    %v363 = vunpack.c.l.b16 %v100
    %v364 = vunpack.c.l.b16 %v101
    %v365 = vunpack.c.l.b16 %v102
    %v366 = vunpack.c.l.b16 %v103
    %v367 = vunpack.c.l.b16 %v104
    %v368 = vunpack.c.l.b16 %v105
    %v369 = vunpack.c.l.b16 %v106
    %v370 = vunpack.c.l.b16 %v107
    %v371 = vunpack.c.l.b16 %v108
    %v372 = vunpack.c.l.b16 %v109
    %v373 = vunpack.c.l.b16 %v110
    %v374 = vunpack.c.l.b16 %v111
    %v375 = vunpack.c.l.b16 %v112
    %v376 = vunpack.c.l.b16 %v113
    %v377 = vunpack.c.l.b16 %v114
    %v378 = vunpack.c.l.b16 %v115
    %v379 = vunpack.c.l.b16 %v116
    %v380 = vunpack.c.l.b16 %v117
    %v381 = vunpack.c.l.b16 %v118
    %v382 = vunpack.c.l.b16 %v119
    %v383 = vunpack.c.l.b16 %v120
    %v384 = vunpack.c.l.b16 %v121
    %v385 = vunpack.c.l.b16 %v122
    %v386 = vunpack.c.l.b16 %v123
    %v387 = vunpack.c.l.b16 %v124
    %v388 = vunpack.c.l.b16 %v125
    %v389 = vunpack.c.l.b16 %v126
    %v390 = vunpack.c.l.b16 %v127
    %v391 = vunpack.c.l.b16 %v128
    %v392 = vunpack.c.l.b16 %v129
    %v393 = vunpack.c.l.b16 %v130
    %v394 = vunpack.c.l.b16 %v131
    %v395 = vunpack.c.l.b16 %v132
    %v396 = vunpack.c.l.b16 %v133
    %v397 = vunpack.c.l.b16 %v134
    %v398 = vunpack.c.l.b16 %v135
    %v399 = vunpack.c.l.b16 %v136
    %v400 = vunpack.c.l.b16 %v137
    %v401 = vunpack.c.l.b16 %v138
    %v402 = vunpack.c.l.b16 %v139
    %v403 = vunpack.c.l.b16 %v140
    %v404 = vunpack.c.l.b16 %v141
    %v405 = vunpack.c.l.b16 %v142
    %v406 = vunpack.c.l.b16 %v143
    %v407 = vunpack.c.l.b16 %v144
    %v408 = vunpack.c.l.b16 %v145
    %v409 = vunpack.c.l.b16 %v146
    %v410 = vunpack.c.l.b16 %v147
    %v411 = vunpack.c.l.b16 %v148
    %v412 = vunpack.c.l.b16 %v149
    %v413 = vunpack.c.l.b16 %v150
    %v414 = vunpack.c.l.b16 %v151
    %v415 = vunpack.c.l.b16 %v152
    %v416 = vunpack.c.l.b16 %v153
    %v417 = vunpack.c.l.b16 %v154
    %v418 = vunpack.c.l.b16 %v155
    %v419 = vunpack.c.l.b16 %v156
    %v420 = vunpack.c.l.b16 %v157
    %v421 = vunpack.c.l.b16 %v158
    %v422 = vunpack.c.l.b16 %v159
    %v423 = vunpack.c.l.b16 %v160
    %v424 = vunpack.c.l.b16 %v161
    %v425 = vunpack.c.l.b16 %v162
    %v426 = vunpack.c.l.b16 %v163
    %v427 = vunpack.c.l.b16 %v164
    %v428 = vunpack.c.l.b16 %v165
    %v429 = vunpack.c.l.b16 %v166
    %v430 = vunpack.c.l.b16 %v167
    %v431 = vunpack.c.l.b16 %v168
    %v432 = vunpack.c.l.b16 %v169
    %v433 = vunpack.c.l.b16 %v170
    %v434 = vunpack.c.l.b16 %v171
    %v435 = vunpack.c.l.b16 %v172
    %v436 = vunpack.c.l.b16 %v173
    %v437 = vunpack.c.l.b16 %v174
    %v438 = vunpack.c.l.b16 %v175
    %v439 = vunpack.c.l.b16 %v176
    %v440 = vunpack.c.l.b16 %v177
    %v441 = vunpack.c.l.b16 %v178
    %v442 = vunpack.c.l.b16 %v179
    %v443 = vunpack.c.l.b16 %v180
    %v444 = vunpack.c.l.b16 %v181
    %v445 = vunpack.c.l.b16 %v182
    %v446 = vunpack.c.l.b16 %v183
    %v447 = vunpack.c.l.b16 %v184
    %v448 = vunpack.c.l.b16 %v185
    %v449 = vpack.c.b16 %v322, %v321
    %v450 = vpack.c.b16 %v324, %v323
    %v451 = vpack.c.b16 %v326, %v325
    %v452 = vpack.c.b16 %v328, %v327
    %v453 = vpack.c.b16 %v330, %v329
    %v454 = vpack.c.b16 %v332, %v331
    %v455 = vpack.c.b16 %v334, %v333
    %v456 = vpack.c.b16 %v336, %v335
    %v457 = vpack.c.b16 %v338, %v337
    %v458 = vpack.c.b16 %v340, %v339
    %v459 = vpack.c.b16 %v342, %v341
    %v460 = vpack.c.b16 %v344, %v343
    %v461 = vpack.c.b16 %v346, %v345
    %v462 = vpack.c.b16 %v348, %v347
    %v463 = vpack.c.b16 %v350, %v349
    %v464 = vpack.c.b16 %v352, %v351
    %v465 = vpack.c.b16 %v354, %v353
    %v466 = vpack.c.b16 %v356, %v355
    %v467 = vpack.c.b16 %v358, %v357
    %v468 = vpack.c.b16 %v360, %v359
    %v469 = vpack.c.b16 %v362, %v361
    %v470 = vpack.c.b16 %v364, %v363
    %v471 = vpack.c.b16 %v366, %v365
    %v472 = vpack.c.b16 %v368, %v367
    %v473 = vpack.c.b16 %v370, %v369
    %v474 = vpack.c.b16 %v372, %v371
    %v475 = vpack.c.b16 %v374, %v373
    %v476 = vpack.c.b16 %v376, %v375
    %v477 = vpack.c.b16 %v378, %v377
    %v478 = vpack.c.b16 %v380, %v379
    %v479 = vpack.c.b16 %v382, %v381
    %v480 = vpack.c.b16 %v384, %v383
    %v481 = vpack.c.b16 %v386, %v385
    %v482 = vpack.c.b16 %v388, %v387
    %v483 = vpack.c.b16 %v390, %v389
    %v484 = vpack.c.b16 %v392, %v391
    %v485 = vpack.c.b16 %v394, %v393
    %v486 = vpack.c.b16 %v396, %v395
    %v487 = vpack.c.b16 %v398, %v397
    %v488 = vpack.c.b16 %v400, %v399
    %v489 = vpack.c.b16 %v402, %v401
    %v490 = vpack.c.b16 %v404, %v403
    %v491 = vpack.c.b16 %v406, %v405
    %v492 = vpack.c.b16 %v408, %v407
    %v493 = vpack.c.b16 %v410, %v409
    %v494 = vpack.c.b16 %v412, %v411
    %v495 = vpack.c.b16 %v414, %v413
    %v496 = vpack.c.b16 %v416, %v415
    %v497 = vpack.c.b16 %v418, %v417
    %v498 = vpack.c.b16 %v420, %v419
    %v499 = vpack.c.b16 %v422, %v421
    %v500 = vpack.c.b16 %v424, %v423
    %v501 = vpack.c.b16 %v426, %v425
    %v502 = vpack.c.b16 %v428, %v427
    %v503 = vpack.c.b16 %v430, %v429
    %v504 = vpack.c.b16 %v432, %v431
    %v505 = vpack.c.b16 %v434, %v433
    %v506 = vpack.c.b16 %v436, %v435
    %v507 = vpack.c.b16 %v438, %v437
    %v508 = vpack.c.b16 %v440, %v439
    %v509 = vpack.c.b16 %v442, %v441
    %v510 = vpack.c.b16 %v444, %v443
    %v511 = vpack.c.b16 %v446, %v445
    %v512 = vpack.c.b16 %v448, %v447
    %577 = vmatprep.subr.bf16.mxu0 0
    %578 = vmatpush1.bf16.msra.mxu0 %v456
    %579 = vmatprep.subr.bf16.mxu0 0
    %580 = vmatpush1.bf16.msra.mxu0 %v455
    %581 = vmatprep.subr.bf16.mxu0 0
    %582 = vmatpush1.bf16.msra.mxu0 %v454
    %583 = vmatprep.subr.bf16.mxu0 0
    %584 = vmatpush1.bf16.msra.mxu0 %v453
    %585 = vmatprep.subr.bf16.mxu0 0
    %586 = vmatpush1.bf16.msra.mxu0 %v452
    %587 = vmatprep.subr.bf16.mxu0 0
    %588 = vmatpush1.bf16.msra.mxu0 %v451
    %589 = vmatprep.subr.bf16.mxu0 0
    %590 = vmatpush1.bf16.msra.mxu0 %v450
    %591 = vmatprep.subr.bf16.mxu0 0
    %592 = vmatpush1.bf16.msra.mxu0 %v449
    %593 = vmatprep.subr.bf16.mxu0 0
    %594 = vmatpush2.bf16.msra.mxu0 %v464
    %595 = vmatprep.subr.bf16.mxu0 0
    %596 = vmatpush2.bf16.msra.mxu0 %v463
    %597 = vmatprep.subr.bf16.mxu0 0
    %598 = vmatpush2.bf16.msra.mxu0 %v462
    %599 = vmatprep.subr.bf16.mxu0 0
    %600 = vmatpush2.bf16.msra.mxu0 %v461
    %601 = vmatprep.subr.bf16.mxu0 0
    %602 = vmatpush2.bf16.msra.mxu0 %v460
    %603 = vmatprep.subr.bf16.mxu0 0
    %604 = vmatpush2.bf16.msra.mxu0 %v459
    %605 = vmatprep.subr.bf16.mxu0 0
    %606 = vmatpush2.bf16.msra.mxu0 %v458
    %607 = vmatprep.subr.bf16.mxu0 0
    %608 = vmatpush2.bf16.msra.mxu0 %v457
    %609 = vmatprep.mubr.bf16.mxu0 %v49
    %610 = vmatmul.mubr.bf16.gmra.mxu0 %v48
    %v611 = vpop.f32.mrf.mxu0
    %v612 = vadd.f32 %v191, %v611
    %v613 = vpop.f32.mrf.mxu0
    %v614 = vpop.f32.mrf.mxu0
    %v615 = vpop.f32.mrf.mxu0
    %616 = vdwg.mxu0
    %617 = vmatprep.subr.bf16.mxu0 0
    %618 = vmatpush1.bf16.msra.mxu0 %v472
    %619 = vmatprep.subr.bf16.mxu0 0
    %620 = vmatpush1.bf16.msra.mxu0 %v471
    %621 = vmatprep.subr.bf16.mxu0 0
    %622 = vmatpush1.bf16.msra.mxu0 %v470
    %623 = vmatprep.subr.bf16.mxu0 0
    %624 = vmatpush1.bf16.msra.mxu0 %v469
    %625 = vmatprep.subr.bf16.mxu0 0
    %626 = vmatpush1.bf16.msra.mxu0 %v468
    %627 = vmatprep.subr.bf16.mxu0 0
    %628 = vmatpush1.bf16.msra.mxu0 %v467
    %629 = vmatprep.subr.bf16.mxu0 0
    %630 = vmatpush1.bf16.msra.mxu0 %v466
    %631 = vmatprep.subr.bf16.mxu0 0
    %632 = vmatpush1.bf16.msra.mxu0 %v465
    %633 = vmatprep.subr.bf16.mxu0 0
    %634 = vmatpush2.bf16.msra.mxu0 %v480
    %635 = vmatprep.subr.bf16.mxu0 0
    %636 = vmatpush2.bf16.msra.mxu0 %v479
    %637 = vmatprep.subr.bf16.mxu0 0
    %638 = vmatpush2.bf16.msra.mxu0 %v478
    %639 = vmatprep.subr.bf16.mxu0 0
    %640 = vmatpush2.bf16.msra.mxu0 %v477
    %641 = vmatprep.subr.bf16.mxu0 0
    %642 = vmatpush2.bf16.msra.mxu0 %v476
    %643 = vmatprep.subr.bf16.mxu0 0
    %644 = vmatpush2.bf16.msra.mxu0 %v475
    %645 = vmatprep.subr.bf16.mxu0 0
    %646 = vmatpush2.bf16.msra.mxu0 %v474
    %647 = vmatprep.subr.bf16.mxu0 0
    %648 = vmatpush2.bf16.msra.mxu0 %v473
    %649 = vmatprep.mubr.bf16.mxu0 %v51
    %650 = vmatmul.mubr.bf16.gmra.mxu0 %v50
    %v651 = vpop.f32.mrf.mxu0
    %v652 = vadd.f32 %v612, %v651
    %v653 = vpop.f32.mrf.mxu0
    %v654 = vpop.f32.mrf.mxu0
    %v655 = vpop.f32.mrf.mxu0
    %656 = vdwg.mxu0
    %657 = vmatprep.subr.bf16.mxu0 0
    %658 = vmatpush1.bf16.msra.mxu0 %v488
    %659 = vmatprep.subr.bf16.mxu0 0
    %660 = vmatpush1.bf16.msra.mxu0 %v487
    %661 = vmatprep.subr.bf16.mxu0 0
    %662 = vmatpush1.bf16.msra.mxu0 %v486
    %663 = vmatprep.subr.bf16.mxu0 0
    %664 = vmatpush1.bf16.msra.mxu0 %v485
    %665 = vmatprep.subr.bf16.mxu0 0
    %666 = vmatpush1.bf16.msra.mxu0 %v484
    %667 = vmatprep.subr.bf16.mxu0 0
    %668 = vmatpush1.bf16.msra.mxu0 %v483
    %669 = vmatprep.subr.bf16.mxu0 0
    %670 = vmatpush1.bf16.msra.mxu0 %v482
    %671 = vmatprep.subr.bf16.mxu0 0
    %672 = vmatpush1.bf16.msra.mxu0 %v481
    %673 = vmatprep.subr.bf16.mxu0 0
    %674 = vmatpush2.bf16.msra.mxu0 %v496
    %675 = vmatprep.subr.bf16.mxu0 0
    %676 = vmatpush2.bf16.msra.mxu0 %v495
    %677 = vmatprep.subr.bf16.mxu0 0
    %678 = vmatpush2.bf16.msra.mxu0 %v494
    %679 = vmatprep.subr.bf16.mxu0 0
    %680 = vmatpush2.bf16.msra.mxu0 %v493
    %681 = vmatprep.subr.bf16.mxu0 0
    %682 = vmatpush2.bf16.msra.mxu0 %v492
    %683 = vmatprep.subr.bf16.mxu0 0
    %684 = vmatpush2.bf16.msra.mxu0 %v491
    %685 = vmatprep.subr.bf16.mxu0 0
    %686 = vmatpush2.bf16.msra.mxu0 %v490
    %687 = vmatprep.subr.bf16.mxu0 0
    %688 = vmatpush2.bf16.msra.mxu0 %v489
    %689 = vmatprep.mubr.bf16.mxu0 %v53
    %690 = vmatmul.mubr.bf16.gmra.mxu0 %v52
    %v691 = vpop.f32.mrf.mxu0
    %v692 = vadd.f32 %v652, %v691
    %v693 = vpop.f32.mrf.mxu0
    %v694 = vpop.f32.mrf.mxu0
    %v695 = vpop.f32.mrf.mxu0
    %696 = vdwg.mxu0
    %697 = vmatprep.subr.bf16.mxu0 0
    %698 = vmatpush1.bf16.msra.mxu0 %v504
    %699 = vmatprep.subr.bf16.mxu0 0
    %700 = vmatpush1.bf16.msra.mxu0 %v503
    %701 = vmatprep.subr.bf16.mxu0 0
    %702 = vmatpush1.bf16.msra.mxu0 %v502
    %703 = vmatprep.subr.bf16.mxu0 0
    %704 = vmatpush1.bf16.msra.mxu0 %v501
    %705 = vmatprep.subr.bf16.mxu0 0
    %706 = vmatpush1.bf16.msra.mxu0 %v500
    %707 = vmatprep.subr.bf16.mxu0 0
    %708 = vmatpush1.bf16.msra.mxu0 %v499
    %709 = vmatprep.subr.bf16.mxu0 0
    %710 = vmatpush1.bf16.msra.mxu0 %v498
    %711 = vmatprep.subr.bf16.mxu0 0
    %712 = vmatpush1.bf16.msra.mxu0 %v497
    %713 = vmatprep.subr.bf16.mxu0 0
    %714 = vmatpush2.bf16.msra.mxu0 %v512
    %715 = vmatprep.subr.bf16.mxu0 0
    %716 = vmatpush2.bf16.msra.mxu0 %v511
    %717 = vmatprep.subr.bf16.mxu0 0
    %718 = vmatpush2.bf16.msra.mxu0 %v510
    %719 = vmatprep.subr.bf16.mxu0 0
    %720 = vmatpush2.bf16.msra.mxu0 %v509
    %721 = vmatprep.subr.bf16.mxu0 0
    %722 = vmatpush2.bf16.msra.mxu0 %v508
    %723 = vmatprep.subr.bf16.mxu0 0
    %724 = vmatpush2.bf16.msra.mxu0 %v507
    %725 = vmatprep.subr.bf16.mxu0 0
    %726 = vmatpush2.bf16.msra.mxu0 %v506
    %727 = vmatprep.subr.bf16.mxu0 0
    %728 = vmatpush2.bf16.msra.mxu0 %v505
    %729 = vmatprep.mubr.bf16.mxu0 %v55
    %730 = vmatmul.mubr.bf16.gmra.mxu0 %v54
    %v731 = vpop.f32.mrf.mxu0
    %v732 = vadd.f32 %v692, %v731
    %v733 = vpop.f32.mrf.mxu0
    %v734 = vpop.f32.mrf.mxu0
    %v735 = vpop.f32.mrf.mxu0
    %736 = vdwg.mxu0
    %v737 = vmax.f32 %v732, 0.0
    %v738 = vld [vmem:[%s4] sm:$0xf]
    %v739 = vld [vmem:[%s4 + $0x4] sm:$0xf]
    %v740 = vld [vmem:[%s4 + $0x8] sm:$0xf]
    %v741 = vld [vmem:[%s4 + $0xc] sm:$0xf]
    %v742 = vld [vmem:[%s4 + $0x10] sm:$0xf]
    %v743 = vld [vmem:[%s4 + $0x14] sm:$0xf]
    %v744 = vld [vmem:[%s4 + $0x18] sm:$0xf]
    %v745 = vld [vmem:[%s4 + $0x1c] sm:$0xf]
    %v746 = vld [vmem:[%s4 + $0x20] sm:$0xf]
    %v747 = vld [vmem:[%s4 + $0x24] sm:$0xf]
    %v748 = vld [vmem:[%s4 + $0x28] sm:$0xf]
    %v749 = vld [vmem:[%s4 + $0x2c] sm:$0xf]
    %v750 = vld [vmem:[%s4 + $0x30] sm:$0xf]
    %v751 = vld [vmem:[%s4 + $0x34] sm:$0xf]
    %v752 = vld [vmem:[%s4 + $0x38] sm:$0xf]
    %v753 = vld [vmem:[%s4 + $0x3c] sm:$0xf]
    %v754 = vld [vmem:[%s5] sm:$0x1]
    %v756 = vlaneseq
    %v757 = vshrl.u32 %v756, 7
    %v758 = vsub.s32 0, %v757
    %v759 = vrot.slane %v754, %v758
    %v777 = vunpack.c.l.b16 %v738
    %v778 = vunpack.c.l.b16 %v739
    %v779 = vunpack.c.l.b16 %v740
    %v780 = vunpack.c.l.b16 %v741
    %v781 = vunpack.c.l.b16 %v742
    %v782 = vunpack.c.l.b16 %v743
    %v783 = vunpack.c.l.b16 %v744
    %v784 = vunpack.c.l.b16 %v745
    %v785 = vunpack.c.l.b16 %v746
    %v786 = vunpack.c.l.b16 %v747
    %v787 = vunpack.c.l.b16 %v748
    %v788 = vunpack.c.l.b16 %v749
    %v789 = vunpack.c.l.b16 %v750
    %v790 = vunpack.c.l.b16 %v751
    %v791 = vunpack.c.l.b16 %v752
    %v792 = vunpack.c.l.b16 %v753
    %v793 = vpack.c.b16 %v778, %v777
    %v794 = vpack.c.b16 %v780, %v779
    %v795 = vpack.c.b16 %v782, %v781
    %v796 = vpack.c.b16 %v784, %v783
    %v797 = vpack.c.b16 %v786, %v785
    %v798 = vpack.c.b16 %v788, %v787
    %v799 = vpack.c.b16 %v790, %v789
    %v800 = vpack.c.b16 %v792, %v791
    %809 = vmatprep.subr.bf16.mxu0 0
    %810 = vmatpush1.bf16.msra.mxu0 %v800
    %811 = vmatprep.subr.bf16.mxu0 0
    %812 = vmatpush1.bf16.msra.mxu0 %v799
    %813 = vmatprep.subr.bf16.mxu0 0
    %814 = vmatpush1.bf16.msra.mxu0 %v798
    %815 = vmatprep.subr.bf16.mxu0 0
    %816 = vmatpush1.bf16.msra.mxu0 %v797
    %817 = vmatprep.subr.bf16.mxu0 0
    %818 = vmatpush1.bf16.msra.mxu0 %v796
    %819 = vmatprep.subr.bf16.mxu0 0
    %820 = vmatpush1.bf16.msra.mxu0 %v795
    %821 = vmatprep.subr.bf16.mxu0 0
    %822 = vmatpush1.bf16.msra.mxu0 %v794
    %823 = vmatprep.subr.bf16.mxu0 0
    %824 = vmatpush1.bf16.msra.mxu0 %v793
    %825 = vmatprep.subr.bf16.mxu0 0
    %826 = vmatpush2.bf16.msra.mxu0 0
    %827 = vmatprep.subr.bf16.mxu0 0
    %828 = vmatpush2.bf16.msra.mxu0 0
    %829 = vmatprep.subr.bf16.mxu0 0
    %830 = vmatpush2.bf16.msra.mxu0 0
    %831 = vmatprep.subr.bf16.mxu0 0
    %832 = vmatpush2.bf16.msra.mxu0 0
    %833 = vmatprep.subr.bf16.mxu0 0
    %834 = vmatpush2.bf16.msra.mxu0 0
    %835 = vmatprep.subr.bf16.mxu0 0
    %836 = vmatpush2.bf16.msra.mxu0 0
    %837 = vmatprep.subr.bf16.mxu0 0
    %838 = vmatpush2.bf16.msra.mxu0 0
    %839 = vmatprep.subr.bf16.mxu0 0
    %840 = vmatpush2.bf16.msra.mxu0 0
    %841 = vmatprep.mubr.bf16.mxu0 0
    %842 = vmatmul.mubr.bf16.gmra.mxu0 %v57
    %v843 = vpop.f32.mrf.mxu0
    %v844 = vadd.f32 %v759, %v843
    %v845 = vpop.f32.mrf.mxu0
    %v846 = vpop.f32.mrf.mxu0
    %v847 = vpop.f32.mrf.mxu0
    %848 = vdwg.mxu0
    %v849 = vmax.f32 %v844, 0.0
    %v850 = vpack.c.bf16 %v737, %v737
    %v851 = vld [vmem:[%s6] sm:$0xf]
    %v852 = vld [vmem:[%s6 + $0x4] sm:$0xf]
    %v853 = vld [vmem:[%s6 + $0x8] sm:$0xf]
    %v854 = vld [vmem:[%s6 + $0xc] sm:$0xf]
    %v855 = vpack.c.bf16 %v849, %v849
    %v856 = vld [vmem:[%s7] sm:$0xf]
    %v857 = vld [vmem:[%s7 + $0x4] sm:$0xf]
    %v858 = vld [vmem:[%s7 + $0x8] sm:$0xf]
    %v859 = vld [vmem:[%s7 + $0xc] sm:$0xf]
    %v864 = vunpack.c.l.b16 %v856
    %v865 = vunpack.c.l.b16 %v857
    %v866 = vunpack.c.l.b16 %v858
    %v867 = vunpack.c.l.b16 %v859
    %v868 = vpack.c.b16 %v865, %v864
    %v869 = vpack.c.b16 %v867, %v866
    %vm872 = vcmask 261120
    %v874 = vsel %vm872, %v855, 0
    %876 = vmatprep.subr.bf16.mxu0 0
    %877 = vmatpush1.bf16.msra.mxu0 0
    %878 = vmatprep.subr.bf16.mxu0 0
    %879 = vmatpush1.bf16.msra.mxu0 0
    %880 = vmatprep.subr.bf16.mxu0 0
    %881 = vmatpush1.bf16.msra.mxu0 0
    %882 = vmatprep.subr.bf16.mxu0 0
    %883 = vmatpush1.bf16.msra.mxu0 0
    %884 = vmatprep.subr.bf16.mxu0 0
    %885 = vmatpush1.bf16.msra.mxu0 0
    %886 = vmatprep.subr.bf16.mxu0 0
    %887 = vmatpush1.bf16.msra.mxu0 0
    %888 = vmatprep.subr.bf16.mxu0 0
    %889 = vmatpush1.bf16.msra.mxu0 %v869
    %890 = vmatprep.subr.bf16.mxu0 0
    %891 = vmatpush1.bf16.msra.mxu0 %v868
    %892 = vmatprep.subr.bf16.mxu0 0
    %893 = vmatpush2.bf16.msra.mxu0 0
    %894 = vmatprep.subr.bf16.mxu0 0
    %895 = vmatpush2.bf16.msra.mxu0 0
    %896 = vmatprep.subr.bf16.mxu0 0
    %897 = vmatpush2.bf16.msra.mxu0 0
    %898 = vmatprep.subr.bf16.mxu0 0
    %899 = vmatpush2.bf16.msra.mxu0 0
    %900 = vmatprep.subr.bf16.mxu0 0
    %901 = vmatpush2.bf16.msra.mxu0 0
    %902 = vmatprep.subr.bf16.mxu0 0
    %903 = vmatpush2.bf16.msra.mxu0 0
    %904 = vmatprep.subr.bf16.mxu0 0
    %905 = vmatpush2.bf16.msra.mxu0 0
    %906 = vmatprep.subr.bf16.mxu0 0
    %907 = vmatpush2.bf16.msra.mxu0 0
    %908 = vmatprep.mubr.bf16.mxu0 0
    %909 = vmatmul.mubr.bf16.gmra.mxu0 %v874
    %v910 = vpop.f32.mrf.mxu0
    %v911 = vadd.f32 0.0, %v910
    %v912 = vpop.f32.mrf.mxu0
    %v913 = vpop.f32.mrf.mxu0
    %v914 = vpop.f32.mrf.mxu0
    %915 = vdwg.mxu0
    %v920 = vunpack.c.l.b16 %v851
    %v921 = vunpack.c.l.b16 %v852
    %v922 = vunpack.c.l.b16 %v853
    %v923 = vunpack.c.l.b16 %v854
    %v924 = vpack.c.b16 %v921, %v920
    %v925 = vpack.c.b16 %v923, %v922
    %v929 = vsel %vm872, %v850, 0
    %931 = vmatprep.subr.bf16.mxu0 0
    %932 = vmatpush1.bf16.msra.mxu0 0
    %933 = vmatprep.subr.bf16.mxu0 0
    %934 = vmatpush1.bf16.msra.mxu0 0
    %935 = vmatprep.subr.bf16.mxu0 0
    %936 = vmatpush1.bf16.msra.mxu0 0
    %937 = vmatprep.subr.bf16.mxu0 0
    %938 = vmatpush1.bf16.msra.mxu0 0
    %939 = vmatprep.subr.bf16.mxu0 0
    %940 = vmatpush1.bf16.msra.mxu0 0
    %941 = vmatprep.subr.bf16.mxu0 0
    %942 = vmatpush1.bf16.msra.mxu0 0
    %943 = vmatprep.subr.bf16.mxu0 0
    %944 = vmatpush1.bf16.msra.mxu0 %v925
    %945 = vmatprep.subr.bf16.mxu0 0
    %946 = vmatpush1.bf16.msra.mxu0 %v924
    %947 = vmatprep.subr.bf16.mxu0 0
    %948 = vmatpush2.bf16.msra.mxu0 0
    %949 = vmatprep.subr.bf16.mxu0 0
    %950 = vmatpush2.bf16.msra.mxu0 0
    %951 = vmatprep.subr.bf16.mxu0 0
    %952 = vmatpush2.bf16.msra.mxu0 0
    %953 = vmatprep.subr.bf16.mxu0 0
    %954 = vmatpush2.bf16.msra.mxu0 0
    %955 = vmatprep.subr.bf16.mxu0 0
    %956 = vmatpush2.bf16.msra.mxu0 0
    %957 = vmatprep.subr.bf16.mxu0 0
    %958 = vmatpush2.bf16.msra.mxu0 0
    %959 = vmatprep.subr.bf16.mxu0 0
    %960 = vmatpush2.bf16.msra.mxu0 0
    %961 = vmatprep.subr.bf16.mxu0 0
    %962 = vmatpush2.bf16.msra.mxu0 0
    %963 = vmatprep.mubr.bf16.mxu0 0
    %964 = vmatmul.mubr.bf16.gmra.mxu0 %v929
    %v965 = vpop.f32.mrf.mxu0
    %v966 = vadd.f32 %v911, %v965
    %v967 = vpop.f32.mrf.mxu0
    %v968 = vpop.f32.mrf.mxu0
    %v969 = vpop.f32.mrf.mxu0
    %970 = vdwg.mxu0
    %v971 = vld [vmem:[%s8] sm:$0x1]
    %v973 = vlaneseq
    %v974 = vshrl.u32 %v973, 7
    %v975 = vsub.s32 0, %v974
    %v976 = vrot.slane %v971, %v975
    %v978 = vadd.f32 %v966, %v976
    %v979 = vmax.f32 %v978, 0.0
    %v980 = vpack.c.bf16 %v979, %v979
    %v981 = vld [vmem:[%s9] sm:$0xf]
    %v982 = vld [vmem:[%s9 + $0x4] sm:$0xf]
    %v983 = vld [vmem:[%s9 + $0x8] sm:$0xf]
    %v984 = vld [vmem:[%s9 + $0xc] sm:$0xf]
    %v985 = vld [vmem:[%s10] sm:$0x1]
    %v987 = vlaneseq
    %v988 = vshrl.u32 %v987, 7
    %v989 = vsub.s32 0, %v988
    %v990 = vrot.slane %v985, %v989
    %v996 = vunpack.c.l.b16 %v981
    %v997 = vunpack.c.l.b16 %v982
    %v998 = vunpack.c.l.b16 %v983
    %v999 = vunpack.c.l.b16 %v984
    %v1000 = vpack.c.b16 %v997, %v996
    %v1001 = vpack.c.b16 %v999, %v998
    %v1005 = vsel %vm872, %v980, 0
    %1007 = vmatprep.subr.bf16.mxu0 0
    %1008 = vmatpush1.bf16.msra.mxu0 0
    %1009 = vmatprep.subr.bf16.mxu0 0
    %1010 = vmatpush1.bf16.msra.mxu0 0
    %1011 = vmatprep.subr.bf16.mxu0 0
    %1012 = vmatpush1.bf16.msra.mxu0 0
    %1013 = vmatprep.subr.bf16.mxu0 0
    %1014 = vmatpush1.bf16.msra.mxu0 0
    %1015 = vmatprep.subr.bf16.mxu0 0
    %1016 = vmatpush1.bf16.msra.mxu0 0
    %1017 = vmatprep.subr.bf16.mxu0 0
    %1018 = vmatpush1.bf16.msra.mxu0 0
    %1019 = vmatprep.subr.bf16.mxu0 0
    %1020 = vmatpush1.bf16.msra.mxu0 %v1001
    %1021 = vmatprep.subr.bf16.mxu0 0
    %1022 = vmatpush1.bf16.msra.mxu0 %v1000
    %1023 = vmatprep.subr.bf16.mxu0 0
    %1024 = vmatpush2.bf16.msra.mxu0 0
    %1025 = vmatprep.subr.bf16.mxu0 0
    %1026 = vmatpush2.bf16.msra.mxu0 0
    %1027 = vmatprep.subr.bf16.mxu0 0
    %1028 = vmatpush2.bf16.msra.mxu0 0
    %1029 = vmatprep.subr.bf16.mxu0 0
    %1030 = vmatpush2.bf16.msra.mxu0 0
    %1031 = vmatprep.subr.bf16.mxu0 0
    %1032 = vmatpush2.bf16.msra.mxu0 0
    %1033 = vmatprep.subr.bf16.mxu0 0
    %1034 = vmatpush2.bf16.msra.mxu0 0
    %1035 = vmatprep.subr.bf16.mxu0 0
    %1036 = vmatpush2.bf16.msra.mxu0 0
    %1037 = vmatprep.subr.bf16.mxu0 0
    %1038 = vmatpush2.bf16.msra.mxu0 0
    %1039 = vmatprep.mubr.bf16.mxu0 0
    %1040 = vmatmul.mubr.bf16.gmra.mxu0 %v1005
    %v1041 = vpop.f32.mrf.mxu0
    %v1042 = vadd.f32 %v990, %v1041
    %v1043 = vpop.f32.mrf.mxu0
    %v1044 = vpop.f32.mrf.mxu0
    %v1045 = vpop.f32.mrf.mxu0
    %1046 = vdwg.mxu0
    %1047 = vst [vmem:[#allocation2] sm:$0xff] %v1042
    // Predicated region
    $region46: #{_fused_pipeline_forward.1} parent=1 // pred_check
      _
    $region47: #{_fused_pipeline_forward.1} parent=1 // pred_check_branch
      %1049 = sbr.rel (0) target = $region49
    $region48: #{_fused_pipeline_forward.1} parent=1 // pred_region
      %s1051 = ssub.s32 128, 128
      %1052 = vsyncadd [#allocation3], %s1051
      %s1054 = sshll.u32 [#allocation2], 4
      %s1055 = int_to_ptr.vmem [resolvable:$true] %s1054
      %1057 = dma.vmem_to_hbm [thread:$0]  %s1055, 128, %s11, [#allocation3]
    $region49: #{_fused_pipeline_forward.1} parent=1 // pred_fallthru
      _
    // Predicated region
    $region50: #{_fused_pipeline_forward.1} parent=1 // pred_check
      _
    $region51: #{_fused_pipeline_forward.1} parent=1 // pred_check_branch
      %1059 = sbr.rel (0) target = $region53
    $region52: #{_fused_pipeline_forward.1} parent=1 // pred_region
      %1060 = dma.done [#allocation3], 128
    $region53: #{_fused_pipeline_forward.1} parent=1 // pred_fallthru
      _
    %1061 = vsyncpa [#allocation3], 1

</llo_original>
